<compile_context>
chip_gen: v7x
topology: tpu7x:2x2x1
jax: 0.10.0
libtpu: 0.0.40
codegen_flags: <defaults>
</compile_context>

<pallas_src>
import functools

import jax
import jax.numpy as jnp
from jax.experimental import pallas as pl
from jax.experimental.pallas import tpu as pltpu

_LANE = 512                       # lane-dense last dim (multiple of 128)
_TARGET_BLOCK_BYTES = 2 * 1024 * 1024   # ~2 MiB blocks saturate HBM bandwidth


def _round_up(x, m):
    return (x + m - 1) // m * m


def _dropout_kernel(seed_ref, x_ref, o_ref, *, threshold, scale):
    rows, lanes = x_ref.shape
    i = pl.program_id(0)

    # Global flat element index (independent of the tiling -> reproducible mask).
    row_iota = jax.lax.broadcasted_iota(jnp.int32, (rows, lanes), 0)
    lane_iota = jax.lax.broadcasted_iota(jnp.int32, (rows, lanes), 1)
    global_row = (i * rows + row_iota).astype(jnp.uint32)
    flat_idx = global_row * jnp.uint32(lanes) + lane_iota.astype(jnp.uint32)

    # splitmix32-style integer hash -> uniform u32 per element (stateless PRNG).
    h = flat_idx + seed_ref[0].astype(jnp.uint32)
    h = h ^ (h >> 16)
    h = h * jnp.uint32(0x7FEB352D)
    h = h ^ (h >> 15)
    h = h * jnp.uint32(0x846CA68B)
    h = h ^ (h >> 16)

    # Drop with probability ~ threshold / 2^32; pure integer compare.
    keep = h >= jnp.uint32(threshold)

    xv = x_ref[...]
    scaled = xv * jnp.asarray(scale, dtype=xv.dtype)   # native-dtype math
    o_ref[...] = jnp.where(keep, scaled, jnp.zeros_like(scaled))


def stable_dropout(x, drop_prob, *, seed=0, training=True):
    """Pallas implementation of StableDropout.forward (training path)."""
    if (not training) or drop_prob <= 0.0:
        return x  # identity path, exactly like the PyTorch module
    drop_prob = float(drop_prob)
    if drop_prob >= 1.0:
        raise ValueError("drop_prob must be < 1")

    orig_shape = x.shape
    dtype = x.dtype
    total = int(x.size)
    itemsize = jnp.dtype(dtype).itemsize

    # Lane-dense re-tiling of the flattened tensor: (rows, 512).
    n_rows = -(-total // _LANE)
    block_rows = max(8, (_TARGET_BLOCK_BYTES // (_LANE * itemsize)) // 8 * 8)
    block_rows = min(block_rows, _round_up(n_rows, 8))   # don't over-size tiny inputs
    padded_rows = _round_up(n_rows, block_rows)
    padded_total = padded_rows * _LANE

    flat = x.reshape(-1)
    if padded_total != total:
        flat = jnp.concatenate(
            [flat, jnp.zeros((padded_total - total,), dtype=dtype)])
    x2 = flat.reshape(padded_rows, _LANE)

    threshold = min(int(round(drop_prob * 2.0 ** 32)), 2 ** 32 - 1)
    scale = 1.0 / (1.0 - drop_prob)
    seed_arr = jnp.asarray([seed], dtype=jnp.int32)

    kernel = functools.partial(_dropout_kernel, threshold=threshold, scale=scale)

    out = pl.pallas_call(
        kernel,
        out_shape=jax.ShapeDtypeStruct((padded_rows, _LANE), dtype),
        grid_spec=pltpu.PrefetchScalarGridSpec(
            num_scalar_prefetch=1,
            grid=(padded_rows // block_rows,),
            in_specs=[pl.BlockSpec((block_rows, _LANE), lambda i, seed_ref: (i, 0))],
            out_specs=pl.BlockSpec((block_rows, _LANE), lambda i, seed_ref: (i, 0)),
        ),
        compiler_params=pltpu.CompilerParams(
            dimension_semantics=("parallel",),       # stateless RNG -> safe to shard
            vmem_limit_bytes=32 * 1024 * 1024,
        ),
    )(seed_arr, x2)

    return out.reshape(-1)[:total].reshape(orig_shape)


if __name__ == "__main__":
    key = jax.random.PRNGKey(0)
    batch, seq, hidden = 2, 8, 32
    x = jax.random.normal(key, (batch, seq, hidden), dtype=jnp.float32)
    drop_prob = 0.1

    # Training path: dropout kernel.
    y = jax.block_until_ready(stable_dropout(x, drop_prob, seed=0, training=True))
    # Eval path: identity (matches nn.Module with self.training == False).
    y_eval = jax.block_until_ready(stable_dropout(x, drop_prob, training=False))

    assert y.shape == x.shape and y.dtype == x.dtype
    assert jnp.array_equal(y_eval, x)

    # Every surviving element equals x / (1 - p); dropped elements are 0.
    kept = y != 0.0
    expected = x / (1.0 - drop_prob)
    assert jnp.allclose(jnp.where(kept, y, 0.0), jnp.where(kept, expected, 0.0),
                        rtol=1e-5, atol=1e-5)
    keep_frac = float(jnp.mean(kept.astype(jnp.float32)))
    assert 0.7 < keep_frac <= 1.0

    # Determinism: same seed -> identical mask (tile-independent hash RNG).
    y2 = jax.block_until_ready(stable_dropout(x, drop_prob, seed=0, training=True))
    assert jnp.array_equal(y, y2)

    # bf16 smoke test (native-dtype math path).
    xb = x.astype(jnp.bfloat16)
    yb = jax.block_until_ready(stable_dropout(xb, drop_prob, seed=3, training=True))
    assert yb.shape == xb.shape and yb.dtype == jnp.bfloat16
    kb = float(jnp.mean((yb != 0).astype(jnp.float32)))
    assert 0.7 < kb <= 1.0

    print("KERNEL_OK")
</pallas_src>

<mosaic_0001>
module attributes {stable_mosaic.version = 11 : i64} {
  func.func @_dropout_kernel(%arg0: i32, %arg1: memref<1xi32, #tpu.memory_space<smem>>, %arg2: memref<8x512xf32, #tpu.memory_space<vmem>>, %arg3: memref<8x512xf32, #tpu.memory_space<vmem>>) attributes {dimension_semantics = [#tpu.dimension_semantics<parallel>], iteration_bounds = array<i64: 1>, scalar_prefetch = 1 : i64, scratch_operands = 0 : i64, tpu.core_type = #tpu.core_type<tc>, window_params = [{transform_indices = @transform_0, window_bounds = array<i64: 8, 512>}, {transform_indices = @transform_1, window_bounds = array<i64: 8, 512>}]} {
    %0 = tpu.iota {dimensions = array<i32: 0>} : vector<8x512xi32>
    %1 = tpu.iota {dimensions = array<i32: 1>} : vector<8x512xi32>
    %c8_i32 = arith.constant 8 : i32
    %2 = arith.muli %arg0, %c8_i32 : i32
    %3 = vector.broadcast %2 : i32 to vector<8x512xi32>
    %4 = arith.addi %3, %0 : vector<8x512xi32>
    %c512_i32 = arith.constant 512 : i32
    %5 = vector.broadcast %c512_i32 : i32 to vector<8x512xi32>
    %6 = arith.muli %4, %5 : vector<8x512xi32>
    %7 = arith.addi %6, %1 : vector<8x512xi32>
    %c0 = arith.constant 0 : index
    %8 = memref.load %arg1[%c0] : memref<1xi32, #tpu.memory_space<smem>>
    %9 = vector.broadcast %8 : i32 to vector<8x512xi32>
    %10 = arith.addi %7, %9 : vector<8x512xi32>
    %c16_i32 = arith.constant 16 : i32
    %11 = vector.broadcast %c16_i32 : i32 to vector<8x512xi32>
    %12 = arith.shrui %10, %11 : vector<8x512xi32>
    %13 = arith.xori %10, %12 : vector<8x512xi32>
    %c2146121005_i32 = arith.constant 2146121005 : i32
    %14 = vector.broadcast %c2146121005_i32 : i32 to vector<8x512xi32>
    %15 = arith.muli %13, %14 : vector<8x512xi32>
    %c15_i32 = arith.constant 15 : i32
    %16 = vector.broadcast %c15_i32 : i32 to vector<8x512xi32>
    %17 = arith.shrui %15, %16 : vector<8x512xi32>
    %18 = arith.xori %15, %17 : vector<8x512xi32>
    %c-2073254261_i32 = arith.constant -2073254261 : i32
    %19 = vector.broadcast %c-2073254261_i32 : i32 to vector<8x512xi32>
    %20 = arith.muli %18, %19 : vector<8x512xi32>
    %c16_i32_0 = arith.constant 16 : i32
    %21 = vector.broadcast %c16_i32_0 : i32 to vector<8x512xi32>
    %22 = arith.shrui %20, %21 : vector<8x512xi32>
    %23 = arith.xori %20, %22 : vector<8x512xi32>
    %c429496730_i32 = arith.constant 429496730 : i32
    %24 = vector.broadcast %c429496730_i32 : i32 to vector<8x512xi32>
    %25 = arith.cmpi uge, %23, %24 : vector<8x512xi32>
    %c0_1 = arith.constant 0 : index
    %c0_2 = arith.constant 0 : index
    %26 = vector.load %arg2[%c0_1, %c0_2] : memref<8x512xf32, #tpu.memory_space<vmem>>, vector<8x512xf32>
    %cst = arith.constant 1.11111116 : f32
    %27 = vector.broadcast %cst : f32 to vector<8x512xf32>
    %28 = arith.mulf %26, %27 : vector<8x512xf32>
    %cst_3 = arith.constant 0.000000e+00 : f32
    %29 = vector.broadcast %cst_3 : f32 to vector<8x512xf32>
    %30 = arith.select %25, %28, %29 : vector<8x512xi1>, vector<8x512xf32>
    %c0_4 = arith.constant 0 : index
    %c0_5 = arith.constant 0 : index
    %31 = vector.load %arg3[%c0_4, %c0_5] : memref<8x512xf32, #tpu.memory_space<vmem>>, vector<8x512xf32>
    tpu.vector_store %arg3[%c0_4, %c0_5], %30 {strides = array<i32>} : memref<8x512xf32, #tpu.memory_space<vmem>>, vector<8x512xf32>,
    return
  }
  func.func @transform_0(%arg0: i32, %arg1: memref<1xi32, #tpu.memory_space<smem>>) -> (i32, i32) {
    %c0_i32 = arith.constant 0 : i32
    %c0_i32_0 = arith.constant 0 : i32
    return %arg0, %c0_i32 : i32, i32
  }
  func.func @transform_1(%arg0: i32, %arg1: memref<1xi32, #tpu.memory_space<smem>>) -> (i32, i32) {
    %c0_i32 = arith.constant 0 : i32
    %c0_i32_0 = arith.constant 0 : i32
    return %arg0, %c0_i32 : i32, i32
  }
}

</mosaic_0001>

<llo_original>
// kernel: tpu_custom_call.1
$region0: #{tpu_custom_call.1}
  #allocation0 [shape = 'u32[]', space=smem, size = 0x4, offset = 0x4, fixed_abs, tag = 'smem constant byte address 0x4 - core index']
  #allocation1 [shape = 'u32[144,128]{1,0:T(1,128)}', space=vmem, size = 0x12000, scoped, tag = 'internal scratch']
  #allocation2 [shape = 's32[1]{0}', space=sflag, size = 0x4, scoped, tag = 'scoped memory for tpu_custom_call.1']
  #allocation3 [shape = 's32[1]{0:T(128)S(6)}', space=smem, size = 0x200, scoped, tag = 'prefetched SMEM operand 0']
  %s0 = inlined_call_operand.<no memory space> [shape: s32[1], index: 0, kind: input, shape index: {}]
  %s1 = inlined_call_operand.hbm [shape: f32[8,512], index: 1, kind: input, shape index: {}]
  %s2 = inlined_call_operand.hbm [shape: f32[8,512], index: 2, kind: output, shape index: {}]
  %s3 = sld [smem:[#allocation0]]
  $region18: #{tpu_custom_call.1} parent=0
    _
  %s5 = ssub.s32 1, %s3
  %s6 = scalar_select 0, %s5, %s3
  %7 = sst [smem:[#allocation3]] %s0
  $region1: #{tpu_custom_call.1} parent=0
    #allocation4 [shape = 'u8[16384]{0}', space=vmem, size = 0x4000, scoped, tag = 'input window, operand 1, single buffered']
    #allocation5 [shape = 's32[1]{0}', space=sflag, size = 0x4, scoped, tag = 'scoped memory for tpu_custom_call.1']
    #allocation6 [shape = 's32[1]{0}', space=sflag, size = 0x4, scoped, tag = 'scoped memory for tpu_custom_call.1']
    #allocation7 [shape = 'u8[16384]{0}', space=vmem, size = 0x4000, scoped, tag = 'output window, operand 0, single buffered']
    %8 = vsyncpa [#allocation5], 0
    %9 = vsyncpa [#allocation6], 0
    // Predicated region
    $region2: #{tpu_custom_call.1} parent=1 // pred_check
      _
    $region3: #{tpu_custom_call.1} parent=1 // pred_check_branch
      %11 = sbr.rel (0) target = $region5
    $region4: #{tpu_custom_call.1} parent=1 // pred_region
      %s13 = ssub.s32 512, 512
      %14 = vsyncadd [#allocation5], %s13
      %s16 = sshll.u32 [#allocation4], 4
      %s17 = int_to_ptr.vmem [resolvable:$true] %s16
      %19 = dma.hbm_to_vmem [thread:$0]  %s1, 512, %s17, [#allocation5]
    $region5: #{tpu_custom_call.1} parent=1 // pred_fallthru
      _
    // Predicated region
    $region6: #{tpu_custom_call.1} parent=1 // pred_check
      _
    $region7: #{tpu_custom_call.1} parent=1 // pred_check_branch
      %21 = sbr.rel (0) target = $region9
    $region8: #{tpu_custom_call.1} parent=1 // pred_region
      %22 = dma.done [#allocation5], 512
    $region9: #{tpu_custom_call.1} parent=1 // pred_fallthru
      _
    %v23 = vlaneseq
    %v24 = vshrl.u32 %v23, 7
    %v25 = vlaneseq
    %v26 = vand.u32 %v25, 127
    %v27 = vadd.s32 %v26, 128
    %v28 = vadd.s32 %v26, 256
    %v29 = vadd.s32 %v26, 384
    %s30 = smul.u32 0, 8
    %v31 = vstv %s30
    %v32 = vadd.s32 %v31, %v24
    %v33 = vmul.u32 %v32, 512
    %v34 = vadd.s32 %v33, %v26
    %v35 = vadd.s32 %v33, %v27
    %v36 = vadd.s32 %v33, %v28
    %v37 = vadd.s32 %v33, %v29
    %s38 = sld [smem:[#allocation3]]
    %v39 = vstv %s38
    %v40 = vadd.s32 %v34, %v39
    %v41 = vadd.s32 %v35, %v39
    %v42 = vadd.s32 %v36, %v39
    %v43 = vadd.s32 %v37, %v39
    %v44 = vshrl.u32 %v40, 16
    %v45 = vshrl.u32 %v41, 16
    %v46 = vshrl.u32 %v42, 16
    %v47 = vshrl.u32 %v43, 16
    %v48 = vxor.u32 %v40, %v44
    %v49 = vxor.u32 %v41, %v45
    %v50 = vxor.u32 %v42, %v46
    %v51 = vxor.u32 %v43, %v47
    %v52 = vmul.u32 %v48, 2146121005
    %v53 = vmul.u32 %v49, 2146121005
    %v54 = vmul.u32 %v50, 2146121005
    %v55 = vmul.u32 %v51, 2146121005
    %v56 = vshrl.u32 %v52, 15
    %v57 = vshrl.u32 %v53, 15
    %v58 = vshrl.u32 %v54, 15
    %v59 = vshrl.u32 %v55, 15
    %v60 = vxor.u32 %v52, %v56
    %v61 = vxor.u32 %v53, %v57
    %v62 = vxor.u32 %v54, %v58
    %v63 = vxor.u32 %v55, %v59
    %v64 = vmul.u32 %v60, 2221713035
    %v65 = vmul.u32 %v61, 2221713035
    %v66 = vmul.u32 %v62, 2221713035
    %v67 = vmul.u32 %v63, 2221713035
    %v68 = vshrl.u32 %v64, 16
    %v69 = vshrl.u32 %v65, 16
    %v70 = vshrl.u32 %v66, 16
    %v71 = vshrl.u32 %v67, 16
    %v72 = vxor.u32 %v64, %v68
    %v73 = vxor.u32 %v65, %v69
    %v74 = vxor.u32 %v66, %v70
    %v75 = vxor.u32 %v67, %v71
    %vm76 = vcmp.ge.u32.totalorder %v72, 429496730
    %vm77 = vcmp.ge.u32.totalorder %v73, 429496730
    %vm78 = vcmp.ge.u32.totalorder %v74, 429496730
    %vm79 = vcmp.ge.u32.totalorder %v75, 429496730
    %v80 = vld [vmem:[#allocation4] sm:$0xff]
    %v81 = vld [vmem:[#allocation4 + $0x8] sm:$0xff]
    %v82 = vld [vmem:[#allocation4 + $0x10] sm:$0xff]
    %v83 = vld [vmem:[#allocation4 + $0x18] sm:$0xff]
    %v84 = vmul.f32 %v80, 1.1111112
    %v85 = vmul.f32 %v81, 1.1111112
    %v86 = vmul.f32 %v82, 1.1111112
    %v87 = vmul.f32 %v83, 1.1111112
    %v88 = vsel %vm76, %v84, 0.0
    %v89 = vsel %vm77, %v85, 0.0
    %v90 = vsel %vm78, %v86, 0.0
    %v91 = vsel %vm79, %v87, 0.0
    %92 = vst [vmem:[#allocation7] sm:$0xff] %v88
    %93 = vst [vmem:[#allocation7 + $0x8] sm:$0xff] %v89
    %94 = vst [vmem:[#allocation7 + $0x10] sm:$0xff] %v90
    %95 = vst [vmem:[#allocation7 + $0x18] sm:$0xff] %v91
    // Predicated region
    $region10: #{tpu_custom_call.1} parent=1 // pred_check
      _
    $region11: #{tpu_custom_call.1} parent=1 // pred_check_branch
      %97 = sbr.rel (0) target = $region13
    $region12: #{tpu_custom_call.1} parent=1 // pred_region
      %s99 = ssub.s32 512, 512
      %100 = vsyncadd [#allocation6], %s99
      %s102 = sshll.u32 [#allocation7], 4
      %s103 = int_to_ptr.vmem [resolvable:$true] %s102
      %105 = dma.vmem_to_hbm [thread:$0]  %s103, 512, %s2, [#allocation6]
    $region13: #{tpu_custom_call.1} parent=1 // pred_fallthru
      _
    // Predicated region
    $region14: #{tpu_custom_call.1} parent=1 // pred_check
      _
    $region15: #{tpu_custom_call.1} parent=1 // pred_check_branch
      %107 = sbr.rel (0) target = $region17
    $region16: #{tpu_custom_call.1} parent=1 // pred_region
      %108 = dma.done [#allocation6], 512
    $region17: #{tpu_custom_call.1} parent=1 // pred_fallthru
      _
    %109 = vsyncpa [#allocation5], 1
    %110 = vsyncpa [#allocation6], 1

</llo_original>
